<compile_context>
chip_gen: v7x
topology: tpu7x:2x2x1
jax: 0.10.0
libtpu: 0.0.40
codegen_flags: <defaults>
</compile_context>

<pallas_src>
import math
import functools

import jax
import jax.numpy as jnp
import numpy as np
from jax.experimental import pallas as pl
from jax.experimental.pallas import tpu as pltpu


def _cont_emb_kernel(x_ref, sel_ref, basis_ref, phase_ref, w_ref, o_ref):
    # x_ref:     (TN, GP)    packed continuous values (G valid cols, rest zero)
    # sel_ref:   (GP, LANE)  bf16 0/1 selection: col l picks packed col l//D
    # basis_ref: (1, LANE)   basis[(l % D) // 2] per lane
    # phase_ref: (1, LANE)   0.0 on sin lanes, pi/2 on cos lanes
    # w_ref:     (1, LANE)   learnable scale per lane
    # o_ref:     (TN, LANE)  lane-dense output tile
    x = x_ref[...]                                        # (TN, GP) f32

    # Exact 3-way bf16 split: x == hi + mid + lo, every term exactly
    # representable in bf16, so the bf16 MXU matmuls below are exact and the
    # replicated value matches pure-f32 math bit-for-bit.
    hi = x.astype(jnp.bfloat16)
    r1 = x - hi.astype(jnp.float32)
    mid = r1.astype(jnp.bfloat16)
    lo = (r1 - mid.astype(jnp.float32)).astype(jnp.bfloat16)

    sel = sel_ref[...]                                    # (GP, LANE) bf16 0/1
    # Lane-group replication on the MXU (extended slot) — VALU stays free for
    # the sin polynomial, which is the binding unit.
    xrep = (jnp.dot(hi, sel, preferred_element_type=jnp.float32)
            + jnp.dot(mid, sel, preferred_element_type=jnp.float32)
            + jnp.dot(lo, sel, preferred_element_type=jnp.float32))

    # Single transcendental per element: cos(a) == sin(a + pi/2).
    ang = xrep * basis_ref[...] + phase_ref[...]
    val = jnp.sin(ang)
    o_ref[...] = (val * w_ref[...]).astype(o_ref.dtype)


@functools.partial(jax.jit, static_argnames=("hidden_dims", "out_dtype", "row_tile"))
def continuous_embedding(x, weight, basis, *, hidden_dims,
                         out_dtype=jnp.float32, row_tile=4096):
    """x: (..., seq_len) float -> (..., seq_len, hidden_dims)."""
    D = hidden_dims
    assert D % 2 == 0
    assert weight.shape == (D,)
    assert basis.shape == (D // 2,)

    orig_shape = x.shape
    xf = x.reshape(-1).astype(jnp.float32)                # (N,)
    n = xf.shape[0]

    # Lane packing: G original rows share one 128-lane vreg row so the output
    # tile is lane-dense (unmasked vst, full VPU/EUP lanes).
    if D <= 128 and 128 % D == 0:
        G = 128 // D
    else:
        G = 1                                             # D a lane multiple (or odd case)
    LANE = G * D

    npack = -(-n // G)                                    # packed rows
    npack8 = -(-npack // 8) * 8                           # sublane-align only (<=7 rows pad)
    n_pad = npack8 * G
    x_packed = jnp.pad(xf, (0, n_pad - n)).reshape(npack8, G)

    # Widen packed minor dim to >= 8 zero columns: free (tile is lane-padded
    # anyway) and keeps the MXU contraction dim sublane-aligned.
    GP = max(G, 8)
    if GP != G:
        x_packed = jnp.pad(x_packed, ((0, 0), (0, GP - G)))

    tn = min(row_tile, npack8)
    grid = (-(-npack8 // tn),)

    # Per-lane packed constants (numpy -> folded at trace time where possible).
    lane = np.arange(LANE)
    d_idx = lane % D                                      # output feature index per lane
    group = lane // D                                     # lane-group per lane
    sel = (group[None, :] == np.arange(GP)[:, None]).astype(np.float32)
    sel = jnp.asarray(sel, dtype=jnp.bfloat16)                              # (GP, LANE)
    phase = np.where(d_idx % 2 == 0, 0.0, math.pi / 2.0).reshape(1, LANE)
    phase = jnp.asarray(phase, dtype=jnp.float32)                           # (1, LANE)
    basis_row = basis.astype(jnp.float32)[d_idx // 2].reshape(1, LANE)      # (1, LANE)
    w_row = weight.astype(jnp.float32)[d_idx].reshape(1, LANE)              # (1, LANE)

    out_itemsize = jnp.dtype(out_dtype).itemsize
    cost = pl.CostEstimate(
        flops=int(3 * 2 * npack8 * GP * LANE + 5 * npack8 * LANE),
        transcendentals=int(npack8 * LANE),
        bytes_accessed=int(npack8 * GP * 4 + npack8 * LANE * out_itemsize),
    )

    out = pl.pallas_call(
        _cont_emb_kernel,
        out_shape=jax.ShapeDtypeStruct((npack8, LANE), out_dtype),
        grid_spec=pltpu.PrefetchScalarGridSpec(
            num_scalar_prefetch=0,
            grid=grid,
            in_specs=[
                pl.BlockSpec((tn, GP), lambda i: (i, 0)),     # packed x rows
                pl.BlockSpec((GP, LANE), lambda i: (0, 0)),   # 0/1 selection (bf16)
                pl.BlockSpec((1, LANE), lambda i: (0, 0)),    # packed basis
                pl.BlockSpec((1, LANE), lambda i: (0, 0)),    # sin/cos phase
                pl.BlockSpec((1, LANE), lambda i: (0, 0)),    # packed weight
            ],
            out_specs=pl.BlockSpec((tn, LANE), lambda i: (i, 0)),
        ),
        compiler_params=pltpu.CompilerParams(
            dimension_semantics=("parallel",),                # v7x: shard rows across 2 TCs
            vmem_limit_bytes=32 * 1024 * 1024,                # covers double-buffered tiles
        ),
        cost_estimate=cost,
    )(x_packed, sel, basis_row, phase, w_row)

    # Packed (npack8, G*D) is contiguous-identical to (n_pad, D); slice only
    # when sublane-alignment padding was actually added.
    out = out.reshape(n_pad, D)
    if n_pad != n:
        out = out[:n]
    return out.reshape(orig_shape + (D,))


def reference(x, weight, basis):
    """Pure-JAX reference mirroring the PyTorch forward exactly."""
    ang = basis[None, :] * x[..., None]                       # (..., S, D/2)
    stacked = jnp.stack((jnp.sin(ang), jnp.cos(ang)), axis=-1)
    flat = stacked.reshape(stacked.shape[:-2] + (-1,))        # (..., S, D)
    return (weight * flat).astype(weight.dtype)


if __name__ == "__main__":
    hidden_dims = 32
    batch, seq = 2, 8

    key = jax.random.PRNGKey(0)
    k_w, k_x = jax.random.split(key)

    # Deterministic parameter init: weight ~ N(0, 0.02), basis from formula.
    weight = (0.02 * jax.random.normal(k_w, (hidden_dims,))).astype(jnp.float32)
    half = jnp.arange(0, hidden_dims, 2, dtype=jnp.float32)
    basis = jnp.exp(-half * math.log(10000.0) / hidden_dims)

    x = jax.random.uniform(k_x, (batch, seq), dtype=jnp.float32) * 10.0

    out = continuous_embedding(x, weight, basis, hidden_dims=hidden_dims)
    out = jax.block_until_ready(out)

    ref = reference(x, weight, basis)
    assert out.shape == (batch, seq, hidden_dims), out.shape
    assert out.dtype == jnp.float32
    assert jnp.allclose(out, ref, atol=1e-5, rtol=1e-5), \
        float(jnp.max(jnp.abs(out - ref)))

    print("KERNEL_OK")
</pallas_src>

<mosaic_0001>
module attributes {stable_mosaic.version = 11 : i64} {
  func.func @_cont_emb_kernel(%arg0: i32, %arg1: memref<8x8xf32, #tpu.memory_space<vmem>>, %arg2: memref<8x128xbf16, #tpu.memory_space<vmem>>, %arg3: memref<1x128xf32, #tpu.memory_space<vmem>>, %arg4: memref<1x128xf32, #tpu.memory_space<vmem>>, %arg5: memref<1x128xf32, #tpu.memory_space<vmem>>, %arg6: memref<8x128xf32, #tpu.memory_space<vmem>>) attributes {dimension_semantics = [#tpu.dimension_semantics<parallel>], iteration_bounds = array<i64: 1>, scalar_prefetch = 0 : i64, scratch_operands = 0 : i64, tpu.core_type = #tpu.core_type<tc>, window_params = [{transform_indices = @transform_0, window_bounds = array<i64: 8, 8>}, {pipeline_mode = #tpu.pipeline_mode<synchronous>, transform_indices = @transform_1, window_bounds = array<i64: 8, 128>}, {pipeline_mode = #tpu.pipeline_mode<synchronous>, transform_indices = @transform_2, window_bounds = array<i64: 1, 128>}, {pipeline_mode = #tpu.pipeline_mode<synchronous>, transform_indices = @transform_3, window_bounds = array<i64: 1, 128>}, {pipeline_mode = #tpu.pipeline_mode<synchronous>, transform_indices = @transform_4, window_bounds = array<i64: 1, 128>}, {transform_indices = @transform_5, window_bounds = array<i64: 8, 128>}]} {
    %c0 = arith.constant 0 : index
    %c0_0 = arith.constant 0 : index
    %0 = vector.load %arg1[%c0, %c0_0] : memref<8x8xf32, #tpu.memory_space<vmem>>, vector<8x8xf32>
    %1 = arith.truncf %0 : vector<8x8xf32> to vector<8x8xbf16>
    %2 = arith.extf %1 : vector<8x8xbf16> to vector<8x8xf32>
    %3 = arith.subf %0, %2 : vector<8x8xf32>
    %4 = arith.truncf %3 : vector<8x8xf32> to vector<8x8xbf16>
    %5 = arith.extf %4 : vector<8x8xbf16> to vector<8x8xf32>
    %6 = arith.subf %3, %5 : vector<8x8xf32>
    %7 = arith.truncf %6 : vector<8x8xf32> to vector<8x8xbf16>
    %c0_1 = arith.constant 0 : index
    %c0_2 = arith.constant 0 : index
    %8 = vector.load %arg2[%c0_1, %c0_2] : memref<8x128xbf16, #tpu.memory_space<vmem>>, vector<8x128xbf16>
    %cst = arith.constant dense<0.000000e+00> : vector<8x128xf32>
    %9 = tpu.matmul %1, %8, %cst {dimension_numbers = #tpu.dot_dimension_numbers<[1], [0], [0], [1], [0, 0, 1, 1], [], []>} : vector<8x8xbf16>, vector<8x128xbf16>, vector<8x128xf32> -> vector<8x128xf32>
    %cst_3 = arith.constant dense<0.000000e+00> : vector<8x128xf32>
    %10 = tpu.matmul %4, %8, %cst_3 {dimension_numbers = #tpu.dot_dimension_numbers<[1], [0], [0], [1], [0, 0, 1, 1], [], []>} : vector<8x8xbf16>, vector<8x128xbf16>, vector<8x128xf32> -> vector<8x128xf32>
    %11 = arith.addf %9, %10 : vector<8x128xf32>
    %cst_4 = arith.constant dense<0.000000e+00> : vector<8x128xf32>
    %12 = tpu.matmul %7, %8, %cst_4 {dimension_numbers = #tpu.dot_dimension_numbers<[1], [0], [0], [1], [0, 0, 1, 1], [], []>} : vector<8x8xbf16>, vector<8x128xbf16>, vector<8x128xf32> -> vector<8x128xf32>
    %13 = arith.addf %11, %12 : vector<8x128xf32>
    %c0_5 = arith.constant 0 : index
    %c0_6 = arith.constant 0 : index
    %14 = vector.load %arg3[%c0_5, %c0_6] : memref<1x128xf32, #tpu.memory_space<vmem>>, vector<1x128xf32>
    %15 = vector.broadcast %14 : vector<1x128xf32> to vector<8x128xf32>
    %16 = arith.mulf %13, %15 : vector<8x128xf32>
    %c0_7 = arith.constant 0 : index
    %c0_8 = arith.constant 0 : index
    %17 = vector.load %arg4[%c0_7, %c0_8] : memref<1x128xf32, #tpu.memory_space<vmem>>, vector<1x128xf32>
    %18 = vector.broadcast %17 : vector<1x128xf32> to vector<8x128xf32>
    %19 = arith.addf %16, %18 : vector<8x128xf32>
    %20 = math.sin %19 : vector<8x128xf32>
    %c0_9 = arith.constant 0 : index
    %c0_10 = arith.constant 0 : index
    %21 = vector.load %arg5[%c0_9, %c0_10] : memref<1x128xf32, #tpu.memory_space<vmem>>, vector<1x128xf32>
    %22 = vector.broadcast %21 : vector<1x128xf32> to vector<8x128xf32>
    %23 = arith.mulf %20, %22 : vector<8x128xf32>
    %c0_11 = arith.constant 0 : index
    %c0_12 = arith.constant 0 : index
    %24 = vector.load %arg6[%c0_11, %c0_12] : memref<8x128xf32, #tpu.memory_space<vmem>>, vector<8x128xf32>
    tpu.vector_store %arg6[%c0_11, %c0_12], %23 {strides = array<i32>} : memref<8x128xf32, #tpu.memory_space<vmem>>, vector<8x128xf32>,
    return
  }
  func.func @transform_0(%arg0: i32) -> (i32, i32) {
    %c0_i32 = arith.constant 0 : i32
    %c0_i32_0 = arith.constant 0 : i32
    return %arg0, %c0_i32 : i32, i32
  }
  func.func @transform_1(%arg0: i32) -> (i32, i32) {
    %c0_i32 = arith.constant 0 : i32
    %c0_i32_0 = arith.constant 0 : i32
    %c0_i32_1 = arith.constant 0 : i32
    return %c0_i32, %c0_i32_0 : i32, i32
  }
  func.func @transform_2(%arg0: i32) -> (i32, i32) {
    %c0_i32 = arith.constant 0 : i32
    %c0_i32_0 = arith.constant 0 : i32
    %c0_i32_1 = arith.constant 0 : i32
    return %c0_i32, %c0_i32_0 : i32, i32
  }
  func.func @transform_3(%arg0: i32) -> (i32, i32) {
    %c0_i32 = arith.constant 0 : i32
    %c0_i32_0 = arith.constant 0 : i32
    %c0_i32_1 = arith.constant 0 : i32
    return %c0_i32, %c0_i32_0 : i32, i32
  }
  func.func @transform_4(%arg0: i32) -> (i32, i32) {
    %c0_i32 = arith.constant 0 : i32
    %c0_i32_0 = arith.constant 0 : i32
    %c0_i32_1 = arith.constant 0 : i32
    return %c0_i32, %c0_i32_0 : i32, i32
  }
  func.func @transform_5(%arg0: i32) -> (i32, i32) {
    %c0_i32 = arith.constant 0 : i32
    %c0_i32_0 = arith.constant 0 : i32
    return %arg0, %c0_i32 : i32, i32
  }
}

</mosaic_0001>

<llo_original>
// kernel: continuous_embedding.1
$region0: #{continuous_embedding.1}
  #allocation0 [shape = 'u32[]', space=smem, size = 0x4, offset = 0x4, fixed_abs, tag = 'smem constant byte address 0x4 - core index']
  #allocation1 [shape = 'u32[144,128]{1,0:T(1,128)}', space=vmem, size = 0x12000, scoped, tag = 'internal scratch']
  %s0 = inlined_call_operand.vmem [shape: f32[8,8], index: 0, kind: input, shape index: {}]
  %s1 = inlined_call_operand.vmem [shape: bf16[8,128], index: 1, kind: input, shape index: {}]
  %s2 = inlined_call_operand.vmem [shape: f32[1,128], index: 2, kind: input, shape index: {}]
  %s3 = inlined_call_operand.vmem [shape: f32[1,128], index: 3, kind: input, shape index: {}]
  %s4 = inlined_call_operand.vmem [shape: f32[1,128], index: 4, kind: input, shape index: {}]
  %s5 = inlined_call_operand.vmem [shape: f32[8,128], index: 5, kind: output, shape index: {}]
  %s6 = sld [smem:[#allocation0]]
  $region30: #{continuous_embedding.1} parent=0
    _
  %s8 = ssub.s32 1, %s6
  %s9 = scalar_select 0, %s8, %s6
  // Predicated region
  $region2: #{continuous_embedding.1} parent=0 // pred_check
    _
  $region3: #{continuous_embedding.1} parent=0 // pred_check_branch
    %11 = sbr.rel (0) target = $region5
  $region4: #{continuous_embedding.1} parent=0 // pred_region
    _
  $region5: #{continuous_embedding.1} parent=0 // pred_fallthru
    _
  // Predicated region
  $region6: #{continuous_embedding.1} parent=0 // pred_check
    _
  $region7: #{continuous_embedding.1} parent=0 // pred_check_branch
    %13 = sbr.rel (0) target = $region9
  $region8: #{continuous_embedding.1} parent=0 // pred_region
    _
  $region9: #{continuous_embedding.1} parent=0 // pred_fallthru
    _
  // Predicated region
  $region10: #{continuous_embedding.1} parent=0 // pred_check
    _
  $region11: #{continuous_embedding.1} parent=0 // pred_check_branch
    %15 = sbr.rel (0) target = $region13
  $region12: #{continuous_embedding.1} parent=0 // pred_region
    _
  $region13: #{continuous_embedding.1} parent=0 // pred_fallthru
    _
  // Predicated region
  $region14: #{continuous_embedding.1} parent=0 // pred_check
    _
  $region15: #{continuous_embedding.1} parent=0 // pred_check_branch
    %17 = sbr.rel (0) target = $region17
  $region16: #{continuous_embedding.1} parent=0 // pred_region
    _
  $region17: #{continuous_embedding.1} parent=0 // pred_fallthru
    _
  // Predicated region
  $region18: #{continuous_embedding.1} parent=0 // pred_check
    _
  $region19: #{continuous_embedding.1} parent=0 // pred_check_branch
    %19 = sbr.rel (0) target = $region21
  $region20: #{continuous_embedding.1} parent=0 // pred_region
    _
  $region21: #{continuous_embedding.1} parent=0 // pred_fallthru
    _
  %v21 = vld [vmem:[%s0] sm:$0xff]
  %v22 = vpack.c.bf16 %v21, %v21
  %v23 = vunpack.c.l.bf16 %v22
  %v24 = vsub.f32 %v21, %v23
  %v25 = vpack.c.bf16 %v24, %v24
  %v26 = vunpack.c.l.bf16 %v25
  %v27 = vsub.f32 %v24, %v26
  %v28 = vpack.c.bf16 %v27, %v27
  %v29 = vld [vmem:[%s1] sm:$0xf]
  %vm30 = vcmask 64512
  %v32 = vsel %vm30, %v25, 0
  %vm34 = vcmask 1043456
  %v36 = vsel %vm34, %v29, 0
  %38 = vmatprep.subr.bf16.mxu0 0
  %39 = vmatpush1.bf16.msra.mxu0 %v36
  %40 = vmatprep.subr.bf16.mxu0 0
  %41 = vmatpush1.bf16.msra.mxu0 0
  %42 = vmatprep.subr.bf16.mxu0 0
  %43 = vmatpush1.bf16.msra.mxu0 0
  %44 = vmatprep.subr.bf16.mxu0 0
  %45 = vmatpush1.bf16.msra.mxu0 0
  %46 = vmatprep.subr.bf16.mxu0 0
  %47 = vmatpush1.bf16.msra.mxu0 0
  %48 = vmatprep.subr.bf16.mxu0 0
  %49 = vmatpush1.bf16.msra.mxu0 0
  %50 = vmatprep.subr.bf16.mxu0 0
  %51 = vmatpush1.bf16.msra.mxu0 0
  %52 = vmatprep.subr.bf16.mxu0 0
  %53 = vmatpush1.bf16.msra.mxu0 0
  %54 = vmatprep.subr.bf16.mxu0 0
  %55 = vmatpush1.bf16.msra.mxu0 0
  %56 = vmatprep.subr.bf16.mxu0 0
  %57 = vmatpush1.bf16.msra.mxu0 0
  %58 = vmatprep.subr.bf16.mxu0 0
  %59 = vmatpush1.bf16.msra.mxu0 0
  %60 = vmatprep.subr.bf16.mxu0 0
  %61 = vmatpush1.bf16.msra.mxu0 0
  %62 = vmatprep.subr.bf16.mxu0 0
  %63 = vmatpush1.bf16.msra.mxu0 0
  %64 = vmatprep.subr.bf16.mxu0 0
  %65 = vmatpush1.bf16.msra.mxu0 0
  %66 = vmatprep.subr.bf16.mxu0 0
  %67 = vmatpush1.bf16.msra.mxu0 0
  %68 = vmatprep.subr.bf16.mxu0 0
  %69 = vmatpush1.bf16.msra.mxu0 0
  %70 = vmatprep.mubr.bf16.mxu0 0
  %71 = vmatmul.mubr.bf16.gmra.mrb[0].mxu0 %v32
  %v72 = vpop.f32.mrb[0].mxu0
  %v73 = vadd.f32 0.0, %v72
  %v74 = vpop.f32.mrb[0].mxu0
  %v75 = vpop.f32.mrb[0].mxu0
  %v76 = vpop.f32.mrb[0].mxu0
  %77 = vdwg.mxu0
  %v79 = vsel %vm30, %v22, 0
  %81 = vmatprep.subr.bf16.mxu0 0
  %82 = vmatpush1.bf16.msra.mxu0 %v36
  %83 = vmatprep.subr.bf16.mxu0 0
  %84 = vmatpush1.bf16.msra.mxu0 0
  %85 = vmatprep.subr.bf16.mxu0 0
  %86 = vmatpush1.bf16.msra.mxu0 0
  %87 = vmatprep.subr.bf16.mxu0 0
  %88 = vmatpush1.bf16.msra.mxu0 0
  %89 = vmatprep.subr.bf16.mxu0 0
  %90 = vmatpush1.bf16.msra.mxu0 0
  %91 = vmatprep.subr.bf16.mxu0 0
  %92 = vmatpush1.bf16.msra.mxu0 0
  %93 = vmatprep.subr.bf16.mxu0 0
  %94 = vmatpush1.bf16.msra.mxu0 0
  %95 = vmatprep.subr.bf16.mxu0 0
  %96 = vmatpush1.bf16.msra.mxu0 0
  %97 = vmatprep.subr.bf16.mxu0 0
  %98 = vmatpush1.bf16.msra.mxu0 0
  %99 = vmatprep.subr.bf16.mxu0 0
  %100 = vmatpush1.bf16.msra.mxu0 0
  %101 = vmatprep.subr.bf16.mxu0 0
  %102 = vmatpush1.bf16.msra.mxu0 0
  %103 = vmatprep.subr.bf16.mxu0 0
  %104 = vmatpush1.bf16.msra.mxu0 0
  %105 = vmatprep.subr.bf16.mxu0 0
  %106 = vmatpush1.bf16.msra.mxu0 0
  %107 = vmatprep.subr.bf16.mxu0 0
  %108 = vmatpush1.bf16.msra.mxu0 0
  %109 = vmatprep.subr.bf16.mxu0 0
  %110 = vmatpush1.bf16.msra.mxu0 0
  %111 = vmatprep.subr.bf16.mxu0 0
  %112 = vmatpush1.bf16.msra.mxu0 0
  %113 = vmatprep.mubr.bf16.mxu0 0
  %114 = vmatmul.mubr.bf16.gmra.mrb[0].mxu0 %v79
  %v115 = vpop.f32.mrb[0].mxu0
  %v116 = vadd.f32 %v73, %v115
  %v117 = vpop.f32.mrb[0].mxu0
  %v118 = vpop.f32.mrb[0].mxu0
  %v119 = vpop.f32.mrb[0].mxu0
  %120 = vdwg.mxu0
  %v122 = vsel %vm30, %v28, 0
  %124 = vmatprep.subr.bf16.mxu0 0
  %125 = vmatpush1.bf16.msra.mxu0 %v36
  %126 = vmatprep.subr.bf16.mxu0 0
  %127 = vmatpush1.bf16.msra.mxu0 0
  %128 = vmatprep.subr.bf16.mxu0 0
  %129 = vmatpush1.bf16.msra.mxu0 0
  %130 = vmatprep.subr.bf16.mxu0 0
  %131 = vmatpush1.bf16.msra.mxu0 0
  %132 = vmatprep.subr.bf16.mxu0 0
  %133 = vmatpush1.bf16.msra.mxu0 0
  %134 = vmatprep.subr.bf16.mxu0 0
  %135 = vmatpush1.bf16.msra.mxu0 0
  %136 = vmatprep.subr.bf16.mxu0 0
  %137 = vmatpush1.bf16.msra.mxu0 0
  %138 = vmatprep.subr.bf16.mxu0 0
  %139 = vmatpush1.bf16.msra.mxu0 0
  %140 = vmatprep.subr.bf16.mxu0 0
  %141 = vmatpush1.bf16.msra.mxu0 0
  %142 = vmatprep.subr.bf16.mxu0 0
  %143 = vmatpush1.bf16.msra.mxu0 0
  %144 = vmatprep.subr.bf16.mxu0 0
  %145 = vmatpush1.bf16.msra.mxu0 0
  %146 = vmatprep.subr.bf16.mxu0 0
  %147 = vmatpush1.bf16.msra.mxu0 0
  %148 = vmatprep.subr.bf16.mxu0 0
  %149 = vmatpush1.bf16.msra.mxu0 0
  %150 = vmatprep.subr.bf16.mxu0 0
  %151 = vmatpush1.bf16.msra.mxu0 0
  %152 = vmatprep.subr.bf16.mxu0 0
  %153 = vmatpush1.bf16.msra.mxu0 0
  %154 = vmatprep.subr.bf16.mxu0 0
  %155 = vmatpush1.bf16.msra.mxu0 0
  %156 = vmatprep.mubr.bf16.mxu0 0
  %157 = vmatmul.mubr.bf16.gmra.mrb[0].mxu0 %v122
  %v158 = vpop.f32.mrb[0].mxu0
  %v159 = vadd.f32 0.0, %v158
  %v160 = vpop.f32.mrb[0].mxu0
  %v161 = vpop.f32.mrb[0].mxu0
  %v162 = vpop.f32.mrb[0].mxu0
  %163 = vdwg.mxu0
  %v164 = vadd.f32 %v116, %v159
  %v165 = vld [vmem:[%s2] sm:$0x1]
  %v167 = vlaneseq
  %v168 = vshrl.u32 %v167, 7
  %v169 = vsub.s32 0, %v168
  %v170 = vrot.slane %v165, %v169
  %v172 = vmul.f32 %v164, %v170
  %v173 = vld [vmem:[%s3] sm:$0x1]
  %v175 = vlaneseq
  %v176 = vshrl.u32 %v175, 7
  %v177 = vsub.s32 0, %v176
  %v178 = vrot.slane %v173, %v177
  %v180 = vadd.f32 %v172, %v178
  %v181 = vand.u32 2147483647, %v180
  %vm182 = vcmp.le.f32.partialorder %v181, 0.7853982
  %vm183 = vcmp.lt.s32.totalorder %v180, 0
  %v184 = vand.u32 %v180, 2139095040
  %v185 = vshrl.u32 %v184, 23
  %v186 = vsub.s32 %v185, 127
  %v187 = vand.u32 2147483647, %v180
  %v188 = vand.u32 %v187, 8388607
  %v189 = vor.u32 %v188, 8388608
  %v190 = vsub.s32 0, %v189
  %v191 = vadd.s32 %v186, 1
  %vm192 = vcmp.gt.s32.totalorder %v191, 0
  %v193 = vsel %vm192, %v191, 0
  %v194 = vshrl.u32 %v193, 5
  %v195 = vand.u32 %v193, 31
  %v196 = vsub.s32 32, %v195
  %v197 = vshrl.u32 683565275, %v196
  %v198 = vshll.u32 683565275, %v195
  %v199 = vshrl.u32 2475754826, %v196
  %v200 = vor.u32 %v198, %v199
  %v201 = vshll.u32 2475754826, %v195
  %v202 = vshrl.u32 2131351028, %v196
  %v203 = vor.u32 %v201, %v202
  %v204 = vshll.u32 2131351028, %v195
  %v205 = vshrl.u32 2102212464, %v196
  %v206 = vor.u32 %v204, %v205
  %v207 = vshll.u32 2102212464, %v195
  %v208 = vshrl.u32 920167782, %v196
  %v209 = vor.u32 %v207, %v208
  %v210 = vshll.u32 920167782, %v195
  %v211 = vshrl.u32 1326507024, %v196
  %v212 = vor.u32 %v210, %v211
  %vm213 = vcmp.lt.s32.totalorder %v194, 1
  %vm214 = vcmp.lt.s32.totalorder %v194, 2
  %vm215 = vcmp.lt.s32.totalorder %v194, 3
  %vm216 = vcmp.lt.s32.totalorder %v194, 4
  %v217 = vsel %vm213, %v197, %v200
  %v218 = vsel %vm216, %v206, 2102212464
  %v219 = vsel %vm215, %v203, %v218
  %v220 = vsel %vm214, %v217, %v219
  %v221 = vsel %vm213, %v200, %v203
  %v222 = vsel %vm216, %v209, 920167782
  %v223 = vsel %vm215, %v206, %v222
  %v224 = vsel %vm214, %v221, %v223
  %v225 = vsel %vm213, %v203, %v206
  %v226 = vsel %vm216, %v212, 1326507024
  %v227 = vsel %vm215, %v209, %v226
  %v228 = vsel %vm214, %v225, %v227
  %v229 = vshll.u32 %v189, 8
  %v230 = vmul.u32.u64.compose %v229, %v228
  %v231 = vextract.low.u32 %v230
  %v232 = vextract.high.u32 %v230
  %v233 = vmul.u32.u64.compose %v229, %v224
  %v234 = vextract.low.u32 %v233
  %v235 = vextract.high.u32 %v233
  %v236 = vmul.u32 %v229, %v220
  %v237 = vadd.s32 %v232, %v234
  %vm238 = vc.u32 %v232, %v234
  %v239 = vadd.s32 %v235, 1
  %v240 = vsel %vm238, %v239, %v235
  %v241 = vadd.s32 %v236, %v240
  %v242 = vadd.s32 %v241, 536870912
  %v243 = vshrl.u32 %v242, 30
  %v244 = vshll.u32 %v243, 30
  %v245 = vsub.s32 %v241, %v244
  %vm246 = vcmp.lt.s32.totalorder %v245, 0
  %v247 = vsub.s32 0, %v245
  %v248 = vsel %vm246, %v247, %v245
  %v249 = vclz %v248
  %v250 = vsub.s32 %v249, 2
  %vm251 = vcmp.gt.s32.totalorder 0, %v250
  %v252 = vsel %vm251, 0, %v250
  %v253 = vsub.s32 32, %v252
  %v254 = vshll.u32 %v245, %v252
  %v255 = vshrl.u32 %v237, %v253
  %v256 = vor.u32 %v254, %v255
  %v257 = vsub.s32 4294967266, %v252
  %v258 = vadd.s32 %v257, 127
  %v259 = vshll.u32 %v258, 23
  %v260 = vor.u32 4788187, %v259
  %v261 = vand.u32 2147483647, %v260
  %v263 = vcvt.s32.f32 %v256
  %v264 = vmul.f32 %v263, %v261
  %v265 = vxor.u32 %v264, 2147483648
  %v266 = vsel %vm183, %v265, %v264
  %v267 = vsub.s32 4, %v243
  %v268 = vsel %vm183, %v267, %v243
  %v269 = vsel %vm182, %v180, %v266
  %v270 = vsel %vm182, 0, %v268
  %v271 = vcosq.f32.pop %v269
  %v272 = vsinq.f32.pop %v269
  %vm273 = vweird.f32 %v180
  %v274 = vadd.s32 %v270, 3
  %v275 = vand.u32 %v274, 3
  %vm276 = vcmp.lt.s32.totalorder %v275, 2
  %vm277 = vcmp.eq.s32.totalorder %v275, 0
  %v278 = vxor.u32 %v272, 2147483648
  %v279 = vsel %vm277, %v271, %v278
  %vm280 = vcmp.eq.s32.totalorder %v275, 2
  %v281 = vxor.u32 %v271, 2147483648
  %v282 = vsel %vm280, %v281, %v272
  %v283 = vsel %vm276, %v279, %v282
  %v284 = vsel %vm273, nan, %v283
  %v285 = vld [vmem:[%s4] sm:$0x1]
  %v287 = vlaneseq
  %v288 = vshrl.u32 %v287, 7
  %v289 = vsub.s32 0, %v288
  %v290 = vrot.slane %v285, %v289
  %v292 = vmul.f32 %v284, %v290
  %293 = vst [vmem:[%s5] sm:$0xff] %v292
  // Predicated region
  $region22: #{continuous_embedding.1} parent=0 // pred_check
    _
  $region23: #{continuous_embedding.1} parent=0 // pred_check_branch
    %295 = sbr.rel (0) target = $region25
  $region24: #{continuous_embedding.1} parent=0 // pred_region
    _
  $region25: #{continuous_embedding.1} parent=0 // pred_fallthru
    _
  // Predicated region
  $region26: #{continuous_embedding.1} parent=0 // pred_check
    _
  $region27: #{continuous_embedding.1} parent=0 // pred_check_branch
    %297 = sbr.rel (0) target = $region29
  $region28: #{continuous_embedding.1} parent=0 // pred_region
    _
  $region29: #{continuous_embedding.1} parent=0 // pred_fallthru
    _

</llo_original>
